<compile_context>
chip_gen: v7x
topology: tpu7x:2x2x1
jax: 0.10.0
libtpu: 0.0.40
codegen_flags: <defaults>
</compile_context>

<pallas_src>
import functools

import jax
import jax.numpy as jnp
from jax import lax
from jax.experimental import pallas as pl
from jax.experimental.pallas import tpu as pltpu

_LANE = 128
_NC_SUB = 16     # class-major seg sublane count (bf16 packing)


# ----------------------------------------------------------------------------
# Fused kernel: im2col conv matmul + bias + ReLU + class-major seg head
#               + GAP accumulation + linear cls head.
# Grid = (batch, HW tiles).  Batch axis "parallel", HW axis "arbitrary".
# ----------------------------------------------------------------------------
def _fused_backbone_kernel(p_ref, wc_ref, bc_ref, wst_ref, bst_ref,
                           wh_ref, bh_ref, seg_ref, cls_ref, gap_ref,
                           *, inv_hw):
    t = pl.program_id(1)

    @pl.when(t == 0)
    def _():
        gap_ref[...] = jnp.zeros_like(gap_ref)

    # 3x3 conv as a single im2col matmul: (TILE_HW, 32) @ (32, 128) -> f32.
    acc = jnp.dot(p_ref[0], wc_ref[...], preferred_element_type=jnp.float32)
    feats = jnp.maximum(acc + bc_ref[...], 0.0)            # (TILE_HW, 128) f32
    feats_bf = feats.astype(jnp.bfloat16)

    # Class-major segmentation head: (16, 128) x (TILE_HW, 128) contracting
    # on the channel (last) dims -> (16, TILE_HW); classes on sublanes,
    # pixels on lanes (lane-dense, unmasked stores), bf16 writeback.
    seg_t = lax.dot_general(
        wst_ref[...], feats_bf,
        dimension_numbers=(((1,), (1,)), ((), ())),
        preferred_element_type=jnp.float32)                # (16, TILE_HW)
    seg_ref[0] = (seg_t + bst_ref[...]).astype(seg_ref.dtype)

    # GAP partial sum via MXU matmul with ones (keeps XLU free); the 1/HW
    # scale is applied in f32 at finalization (no bf16-rounded constant).
    ones = jnp.ones((1, feats_bf.shape[0]), jnp.bfloat16)
    gap_ref[...] += jnp.dot(ones, feats_bf, preferred_element_type=jnp.float32)

    @pl.when(t == pl.num_programs(1) - 1)
    def _():
        pooled = (gap_ref[...] * inv_hw).astype(jnp.bfloat16)        # (1, 128)
        cls = jnp.dot(pooled, wh_ref[...], preferred_element_type=jnp.float32)
        cls_ref[0] = (cls + bh_ref[...]).astype(cls_ref.dtype)


def _pick_hw_tile(hw):
    for cand in (2048, 1024, 512, 256, 128):
        if hw % cand == 0:
            return cand
    return hw    # falls back to full-extent block (allowed by Pallas)


def fused_conv_gap_heads(patches_bf16, wconv, bconv, wseg_t, bseg_t,
                         whead, bhead, *, hw):
    B, _, kpad = patches_bf16.shape
    cpad = wconv.shape[-1]
    ncsub = wseg_t.shape[0]
    ncpad = whead.shape[-1]
    tile = _pick_hw_tile(hw)

    seg_shape = jax.ShapeDtypeStruct((B, ncsub, hw), jnp.bfloat16)
    cls_shape = jax.ShapeDtypeStruct((B, 1, ncpad), jnp.float32)

    grid_spec = pltpu.PrefetchScalarGridSpec(
        num_scalar_prefetch=0,
        grid=(B, hw // tile),
        in_specs=[
            pl.BlockSpec((1, tile, kpad), lambda b, t: (b, t, 0)),   # patches
            pl.BlockSpec((kpad, cpad), lambda b, t: (0, 0)),         # conv W
            pl.BlockSpec((1, cpad), lambda b, t: (0, 0)),            # conv b
            pl.BlockSpec((ncsub, cpad), lambda b, t: (0, 0)),        # seg W^T
            pl.BlockSpec((ncsub, 1), lambda b, t: (0, 0)),           # seg b^T
            pl.BlockSpec((cpad, ncpad), lambda b, t: (0, 0)),        # head W
            pl.BlockSpec((1, ncpad), lambda b, t: (0, 0)),           # head b
        ],
        out_specs=[
            pl.BlockSpec((1, ncsub, tile), lambda b, t: (b, 0, t)),  # seg
            pl.BlockSpec((1, 1, ncpad), lambda b, t: (b, 0, 0)),     # cls
        ],
        scratch_shapes=[pltpu.VMEM((1, cpad), jnp.float32)],         # GAP acc
    )
    return pl.pallas_call(
        functools.partial(_fused_backbone_kernel, inv_hw=float(1.0 / hw)),
        out_shape=(seg_shape, cls_shape),
        grid_spec=grid_spec,
        compiler_params=pltpu.CompilerParams(
            dimension_semantics=("parallel", "arbitrary"),
            # 48 MiB: large enough to amortize grid-step overhead on
            # v5e/v6e (128 MiB physical), still safe on v7x (64 MiB/TC).
            vmem_limit_bytes=48 * 1024 * 1024,
        ),
    )(patches_bf16, wconv, bconv, wseg_t, bseg_t, whead, bhead)


# ----------------------------------------------------------------------------
# Model equivalent (returns (cls, seg) like the PyTorch Model.forward)
# ----------------------------------------------------------------------------
class ModelPallas:
    def __init__(self, num_classes=10, c_in=3, c_mid=32, seed=0):
        self.num_classes = num_classes
        self.c_in = c_in
        self.c_mid = c_mid
        self.cpad = _LANE                                   # padded channels
        self.ncpad = _LANE                                  # padded classes (cls)
        self.ncsub = _NC_SUB                                # padded classes (seg)
        self.ktaps = 9 * c_in                               # im2col K (=27)
        self.kpad = -(-self.ktaps // 16) * 16               # pad K to 16 (=32)

        key = jax.random.PRNGKey(seed)
        k1, k2, k3, k4, k5, k6 = jax.random.split(key, 6)
        wc = jax.random.normal(k1, (3, 3, c_in, c_mid), jnp.float32) * 0.1
        bc = jax.random.normal(k2, (c_mid,), jnp.float32) * 0.01
        ws = jax.random.normal(k3, (c_mid, num_classes), jnp.float32) * 0.1
        bs = jax.random.normal(k4, (num_classes,), jnp.float32) * 0.01
        wh = jax.random.normal(k5, (c_mid, num_classes), jnp.float32) * 0.1
        bh = jax.random.normal(k6, (num_classes,), jnp.float32) * 0.01

        # Conv weights as an im2col matrix (kpad, cpad), bf16.
        wc_flat = wc.reshape(self.ktaps, c_mid)
        wc_p = (jnp.zeros((self.kpad, self.cpad), jnp.float32)
                .at[:self.ktaps, :c_mid].set(wc_flat))
        self.w_conv = wc_p.astype(jnp.bfloat16)
        self.b_conv = jnp.zeros((1, self.cpad), jnp.float32).at[0, :c_mid].set(bc)

        # Segmentation head stored TRANSPOSED (class-major): (ncsub, cpad).
        self.w_seg_t = (jnp.zeros((self.ncsub, self.cpad), jnp.float32)
                        .at[:num_classes, :c_mid].set(ws.T).astype(jnp.bfloat16))
        self.b_seg_t = (jnp.zeros((self.ncsub, 1), jnp.float32)
                        .at[:num_classes, 0].set(bs))

        # Classification head (lane-dense): (cpad, ncpad).
        self.w_head = (jnp.zeros((self.cpad, self.ncpad), jnp.float32)
                       .at[:c_mid, :num_classes].set(wh).astype(jnp.bfloat16))
        self.b_head = (jnp.zeros((1, self.ncpad), jnp.float32)
                       .at[0, :num_classes].set(bh))

    @functools.partial(jax.jit, static_argnums=0)
    def forward(self, img_nchw):
        B, _, H, W = img_nchw.shape
        x = jnp.transpose(img_nchw, (0, 2, 3, 1))                    # NHWC
        xp = jnp.pad(x, ((0, 0), (1, 1), (1, 1), (0, 0)))
        # im2col in the wrapper (cin=3 -> 27 taps; tiny HBM blowup, makes the
        # HW tiling inside the kernel halo-free).
        cols = [xp[:, dh:dh + H, dw:dw + W, :]
                for dh in range(3) for dw in range(3)]
        patches = jnp.concatenate(cols, axis=-1).reshape(B, H * W, self.ktaps)
        patches = jnp.pad(patches, ((0, 0), (0, 0), (0, self.kpad - self.ktaps)))
        patches = patches.astype(jnp.bfloat16)

        seg_t, cls_p = fused_conv_gap_heads(
            patches, self.w_conv, self.b_conv, self.w_seg_t, self.b_seg_t,
            self.w_head, self.b_head, hw=H * W)

        nc = self.num_classes
        cls = cls_p[:, 0, :nc]                                        # [B, NC]
        seg = (seg_t[:, :nc, :].astype(jnp.float32)
               .reshape(B, nc, H, W))                                 # [B, NC, H, W]
        return cls, seg

    # Pure-JAX reference (same bf16-rounded weights/activations) for checking.
    def _reference(self, img_nchw):
        B, _, H, W = img_nchw.shape
        x = jnp.transpose(img_nchw, (0, 2, 3, 1))
        xp = jnp.pad(x, ((0, 0), (1, 1), (1, 1), (0, 0)))
        cols = [xp[:, dh:dh + H, dw:dw + W, :]
                for dh in range(3) for dw in range(3)]
        patches = jnp.concatenate(cols, axis=-1).reshape(B, H * W, self.ktaps)
        patches = patches.astype(jnp.bfloat16).astype(jnp.float32)
        wc = self.w_conv.astype(jnp.float32)[:self.ktaps]
        acc = jnp.einsum('bpk,kc->bpc', patches, wc)
        feats = jnp.maximum(acc + self.b_conv.reshape(1, 1, -1), 0.0)
        feats = feats.astype(jnp.bfloat16).astype(jnp.float32)
        seg_t = (jnp.einsum('nc,bpc->bnp',
                            self.w_seg_t.astype(jnp.float32), feats)
                 + self.b_seg_t.reshape(1, self.ncsub, 1))
        pooled = feats.mean(axis=1)
        pooled = pooled.astype(jnp.bfloat16).astype(jnp.float32)
        cls = pooled @ self.w_head.astype(jnp.float32) + self.b_head
        nc = self.num_classes
        return cls[:, :nc], seg_t[:, :nc, :].reshape(B, nc, H, W)


if __name__ == "__main__":
    key = jax.random.PRNGKey(0)
    img = jax.random.normal(key, (2, 3, 16, 16), jnp.float32)   # NCHW input

    model = ModelPallas(num_classes=10, c_in=3, c_mid=32, seed=0)
    cls, seg = model.forward(img)
    cls, seg = jax.block_until_ready((cls, seg))

    assert cls.shape == (2, 10) and cls.dtype == jnp.float32
    assert seg.shape == (2, 10, 16, 16) and seg.dtype == jnp.float32

    cls_ref, seg_ref = model._reference(img)
    assert float(jnp.max(jnp.abs(cls - cls_ref))) < 5e-2
    assert float(jnp.max(jnp.abs(seg - seg_ref))) < 5e-2

    print("KERNEL_OK")
</pallas_src>

<mosaic_0001>
module attributes {stable_mosaic.version = 11 : i64} {
  func.func @_fused_backbone_kernel(%arg0: i32, %arg1: i32, %arg2: memref<1x256x32xbf16, #tpu.memory_space<vmem>>, %arg3: memref<32x128xbf16, #tpu.memory_space<vmem>>, %arg4: memref<1x128xf32, #tpu.memory_space<vmem>>, %arg5: memref<16x128xbf16, #tpu.memory_space<vmem>>, %arg6: memref<16x1xf32, #tpu.memory_space<vmem>>, %arg7: memref<128x128xbf16, #tpu.memory_space<vmem>>, %arg8: memref<1x128xf32, #tpu.memory_space<vmem>>, %arg9: memref<1x16x256xbf16, #tpu.memory_space<vmem>>, %arg10: memref<1x1x128xf32, #tpu.memory_space<vmem>>, %arg11: memref<1x128xf32, #tpu.memory_space<vmem>>) attributes {dimension_semantics = [#tpu.dimension_semantics<parallel>, #tpu.dimension_semantics<arbitrary>], iteration_bounds = array<i64: 2, 1>, scalar_prefetch = 0 : i64, scratch_operands = 1 : i64, tpu.core_type = #tpu.core_type<tc>, window_params = [{transform_indices = @transform_0, window_bounds = array<i64: 1, 256, 32>}, {pipeline_mode = #tpu.pipeline_mode<synchronous>, transform_indices = @transform_1, window_bounds = array<i64: 32, 128>}, {pipeline_mode = #tpu.pipeline_mode<synchronous>, transform_indices = @transform_2, window_bounds = array<i64: 1, 128>}, {pipeline_mode = #tpu.pipeline_mode<synchronous>, transform_indices = @transform_3, window_bounds = array<i64: 16, 128>}, {pipeline_mode = #tpu.pipeline_mode<synchronous>, transform_indices = @transform_4, window_bounds = array<i64: 16, 1>}, {pipeline_mode = #tpu.pipeline_mode<synchronous>, transform_indices = @transform_5, window_bounds = array<i64: 128, 128>}, {pipeline_mode = #tpu.pipeline_mode<synchronous>, transform_indices = @transform_6, window_bounds = array<i64: 1, 128>}, {transform_indices = @transform_7, window_bounds = array<i64: 1, 16, 256>}, {transform_indices = @transform_8, window_bounds = array<i64: 1, 1, 128>}]} {
    %c0_i32 = arith.constant 0 : i32
    %0 = arith.cmpi eq, %arg1, %c0_i32 : i32
    %1 = arith.extui %0 : i1 to i32
    %c0_i32_0 = arith.constant 0 : i32
    %2 = arith.cmpi ne, %1, %c0_i32_0 : i32
    scf.if %2 {
      %cst_24 = arith.constant 0.000000e+00 : f32
      %30 = vector.broadcast %cst_24 : f32 to vector<1x128xf32>
      %c0_25 = arith.constant 0 : index
      %c0_26 = arith.constant 0 : index
      %31 = vector.load %arg11[%c0_25, %c0_26] : memref<1x128xf32, #tpu.memory_space<vmem>>, vector<1x128xf32>
      tpu.vector_store %arg11[%c0_25, %c0_26], %30 {strides = array<i32>} : memref<1x128xf32, #tpu.memory_space<vmem>>, vector<1x128xf32>,
    } else {
    }
    %c0 = arith.constant 0 : index
    %c0_1 = arith.constant 0 : index
    %c0_2 = arith.constant 0 : index
    %3 = vector.load %arg2[%c0, %c0_1, %c0_2] : memref<1x256x32xbf16, #tpu.memory_space<vmem>>, vector<1x256x32xbf16>
    %4 = vector.shape_cast %3 : vector<1x256x32xbf16> to vector<256x32xbf16>
    %c0_3 = arith.constant 0 : index
    %c0_4 = arith.constant 0 : index
    %5 = vector.load %arg3[%c0_3, %c0_4] : memref<32x128xbf16, #tpu.memory_space<vmem>>, vector<32x128xbf16>
    %cst = arith.constant dense<0.000000e+00> : vector<256x128xf32>
    %6 = tpu.matmul %4, %5, %cst {dimension_numbers = #tpu.dot_dimension_numbers<[1], [0], [0], [1], [0, 0, 1, 1], [], []>} : vector<256x32xbf16>, vector<32x128xbf16>, vector<256x128xf32> -> vector<256x128xf32>
    %c0_5 = arith.constant 0 : index
    %c0_6 = arith.constant 0 : index
    %7 = vector.load %arg4[%c0_5, %c0_6] : memref<1x128xf32, #tpu.memory_space<vmem>>, vector<1x128xf32>
    %8 = vector.broadcast %7 : vector<1x128xf32> to vector<256x128xf32>
    %9 = arith.addf %6, %8 : vector<256x128xf32>
    %cst_7 = arith.constant 0.000000e+00 : f32
    %10 = vector.broadcast %cst_7 : f32 to vector<256x128xf32>
    %11 = arith.maximumf %9, %10 : vector<256x128xf32>
    %12 = arith.truncf %11 : vector<256x128xf32> to vector<256x128xbf16>
    %c0_8 = arith.constant 0 : index
    %c0_9 = arith.constant 0 : index
    %13 = vector.load %arg5[%c0_8, %c0_9] : memref<16x128xbf16, #tpu.memory_space<vmem>>, vector<16x128xbf16>
    %cst_10 = arith.constant dense<0.000000e+00> : vector<16x256xf32>
    %14 = tpu.matmul %13, %12, %cst_10 {dimension_numbers = #tpu.dot_dimension_numbers<[1], [1], [0], [0], [0, 0, 1, 0], [], []>} : vector<16x128xbf16>, vector<256x128xbf16>, vector<16x256xf32> -> vector<16x256xf32>
    %c0_11 = arith.constant 0 : index
    %c0_12 = arith.constant 0 : index
    %15 = vector.load %arg6[%c0_11, %c0_12] : memref<16x1xf32, #tpu.memory_space<vmem>>, vector<16x1xf32>
    %16 = vector.broadcast %15 : vector<16x1xf32> to vector<16x256xf32>
    %17 = arith.addf %14, %16 : vector<16x256xf32>
    %18 = arith.truncf %17 : vector<16x256xf32> to vector<16x256xbf16>
    %c0_13 = arith.constant 0 : index
    %c0_14 = arith.constant 0 : index
    %c0_15 = arith.constant 0 : index
    %19 = vector.load %arg9[%c0_13, %c0_14, %c0_15] : memref<1x16x256xbf16, #tpu.memory_space<vmem>>, vector<1x16x256xbf16>
    %20 = vector.shape_cast %19 : vector<1x16x256xbf16> to vector<16x256xbf16>
    %21 = vector.shape_cast %18 : vector<16x256xbf16> to vector<1x16x256xbf16>
    tpu.vector_store %arg9[%c0_13, %c0_14, %c0_15], %21 {strides = array<i32>} : memref<1x16x256xbf16, #tpu.memory_space<vmem>>, vector<1x16x256xbf16>,
    %cst_16 = arith.constant 1.000000e+00 : bf16
    %22 = vector.broadcast %cst_16 : bf16 to vector<1x256xbf16>
    %c0_17 = arith.constant 0 : index
    %c0_18 = arith.constant 0 : index
    %23 = vector.load %arg11[%c0_17, %c0_18] : memref<1x128xf32, #tpu.memory_space<vmem>>, vector<1x128xf32>
    %cst_19 = arith.constant dense<0.000000e+00> : vector<1x128xf32>
    %24 = tpu.matmul %22, %12, %cst_19 {dimension_numbers = #tpu.dot_dimension_numbers<[1], [0], [0], [1], [0, 0, 1, 1], [], []>} : vector<1x256xbf16>, vector<256x128xbf16>, vector<1x128xf32> -> vector<1x128xf32>
    %25 = arith.addf %23, %24 : vector<1x128xf32>
    %c0_20 = arith.constant 0 : index
    %c0_21 = arith.constant 0 : index
    %26 = vector.load %arg11[%c0_20, %c0_21] : memref<1x128xf32, #tpu.memory_space<vmem>>, vector<1x128xf32>
    tpu.vector_store %arg11[%c0_20, %c0_21], %25 {strides = array<i32>} : memref<1x128xf32, #tpu.memory_space<vmem>>, vector<1x128xf32>,
    %c0_i32_22 = arith.constant 0 : i32
    %27 = arith.cmpi eq, %arg1, %c0_i32_22 : i32
    %28 = arith.extui %27 : i1 to i32
    %c0_i32_23 = arith.constant 0 : i32
    %29 = arith.cmpi ne, %28, %c0_i32_23 : i32
    scf.if %29 {
      %c0_24 = arith.constant 0 : index
      %c0_25 = arith.constant 0 : index
      %30 = vector.load %arg11[%c0_24, %c0_25] : memref<1x128xf32, #tpu.memory_space<vmem>>, vector<1x128xf32>
      %cst_26 = arith.constant 3.906250e-03 : f32
      %31 = vector.broadcast %cst_26 : f32 to vector<1x128xf32>
      %32 = arith.mulf %30, %31 : vector<1x128xf32>
      %33 = arith.truncf %32 : vector<1x128xf32> to vector<1x128xbf16>
      %c0_27 = arith.constant 0 : index
      %c0_28 = arith.constant 0 : index
      %34 = vector.load %arg7[%c0_27, %c0_28] : memref<128x128xbf16, #tpu.memory_space<vmem>>, vector<128x128xbf16>
      %cst_29 = arith.constant dense<0.000000e+00> : vector<1x128xf32>
      %35 = tpu.matmul %33, %34, %cst_29 {dimension_numbers = #tpu.dot_dimension_numbers<[1], [0], [0], [1], [0, 0, 1, 1], [], []>} : vector<1x128xbf16>, vector<128x128xbf16>, vector<1x128xf32> -> vector<1x128xf32>
      %c0_30 = arith.constant 0 : index
      %c0_31 = arith.constant 0 : index
      %36 = vector.load %arg8[%c0_30, %c0_31] : memref<1x128xf32, #tpu.memory_space<vmem>>, vector<1x128xf32>
      %37 = arith.addf %35, %36 : vector<1x128xf32>
      %c0_32 = arith.constant 0 : index
      %c0_33 = arith.constant 0 : index
      %c0_34 = arith.constant 0 : index
      %38 = vector.load %arg10[%c0_32, %c0_33, %c0_34] : memref<1x1x128xf32, #tpu.memory_space<vmem>>, vector<1x1x128xf32>
      %39 = vector.shape_cast %38 : vector<1x1x128xf32> to vector<1x128xf32>
      %40 = vector.shape_cast %37 : vector<1x128xf32> to vector<1x1x128xf32>
      tpu.vector_store %arg10[%c0_32, %c0_33, %c0_34], %40 {strides = array<i32>} : memref<1x1x128xf32, #tpu.memory_space<vmem>>, vector<1x1x128xf32>,
    } else {
    }
    return
  }
  func.func @transform_0(%arg0: i32, %arg1: i32) -> (i32, i32, i32) {
    %c0_i32 = arith.constant 0 : i32
    %c0_i32_0 = arith.constant 0 : i32
    return %arg0, %arg1, %c0_i32 : i32, i32, i32
  }
  func.func @transform_1(%arg0: i32, %arg1: i32) -> (i32, i32) {
    %c0_i32 = arith.constant 0 : i32
    %c0_i32_0 = arith.constant 0 : i32
    %c0_i32_1 = arith.constant 0 : i32
    return %c0_i32, %c0_i32_0 : i32, i32
  }
  func.func @transform_2(%arg0: i32, %arg1: i32) -> (i32, i32) {
    %c0_i32 = arith.constant 0 : i32
    %c0_i32_0 = arith.constant 0 : i32
    %c0_i32_1 = arith.constant 0 : i32
    return %c0_i32, %c0_i32_0 : i32, i32
  }
  func.func @transform_3(%arg0: i32, %arg1: i32) -> (i32, i32) {
    %c0_i32 = arith.constant 0 : i32
    %c0_i32_0 = arith.constant 0 : i32
    %c0_i32_1 = arith.constant 0 : i32
    return %c0_i32, %c0_i32_0 : i32, i32
  }
  func.func @transform_4(%arg0: i32, %arg1: i32) -> (i32, i32) {
    %c0_i32 = arith.constant 0 : i32
    %c0_i32_0 = arith.constant 0 : i32
    %c0_i32_1 = arith.constant 0 : i32
    return %c0_i32, %c0_i32_0 : i32, i32
  }
  func.func @transform_5(%arg0: i32, %arg1: i32) -> (i32, i32) {
    %c0_i32 = arith.constant 0 : i32
    %c0_i32_0 = arith.constant 0 : i32
    %c0_i32_1 = arith.constant 0 : i32
    return %c0_i32, %c0_i32_0 : i32, i32
  }
  func.func @transform_6(%arg0: i32, %arg1: i32) -> (i32, i32) {
    %c0_i32 = arith.constant 0 : i32
    %c0_i32_0 = arith.constant 0 : i32
    %c0_i32_1 = arith.constant 0 : i32
    return %c0_i32, %c0_i32_0 : i32, i32
  }
  func.func @transform_7(%arg0: i32, %arg1: i32) -> (i32, i32, i32) {
    %c0_i32 = arith.constant 0 : i32
    %c0_i32_0 = arith.constant 0 : i32
    return %arg0, %c0_i32, %arg1 : i32, i32, i32
  }
  func.func @transform_8(%arg0: i32, %arg1: i32) -> (i32, i32, i32) {
    %c0_i32 = arith.constant 0 : i32
    %c0_i32_0 = arith.constant 0 : i32
    %c0_i32_1 = arith.constant 0 : i32
    return %arg0, %c0_i32, %c0_i32_0 : i32, i32, i32
  }
}

</mosaic_0001>

<llo_original>
// kernel: forward.1
$region0: #{forward.1}
  #allocation0 [shape = 'u32[]', space=smem, size = 0x4, offset = 0x4, fixed_abs, tag = 'smem constant byte address 0x4 - core index']
  #allocation1 [shape = 'u32[144,128]{1,0:T(1,128)}', space=vmem, size = 0x12000, scoped, tag = 'internal scratch']
  #allocation2 [shape = 'f32[1,128]{1,0:T(1,128)}', space=vmem, size = 0x200, scoped, tag = 'scratch operand']
  %s0 = inlined_call_operand.vmem [shape: bf16[2,256,32], index: 0, kind: input, shape index: {}]
  %s1 = inlined_call_operand.vmem [shape: bf16[32,128], index: 1, kind: input, shape index: {}]
  %s2 = inlined_call_operand.vmem [shape: f32[1,128], index: 2, kind: input, shape index: {}]
  %s3 = inlined_call_operand.vmem [shape: bf16[16,128], index: 3, kind: input, shape index: {}]
  %s4 = inlined_call_operand.vmem [shape: f32[16,1], index: 4, kind: input, shape index: {}]
  %s5 = inlined_call_operand.vmem [shape: bf16[128,128], index: 5, kind: input, shape index: {}]
  %s6 = inlined_call_operand.vmem [shape: f32[1,128], index: 6, kind: input, shape index: {}]
  %s7 = inlined_call_operand.vmem [shape: bf16[2,16,256], index: 7, kind: output, shape index: {0}]
  %s8 = inlined_call_operand.hbm [shape: f32[2,1,128], index: 8, kind: output, shape index: {1}]
  %9 = xla_tuple %s7, %s8
  %s10 = sld [smem:[#allocation0]]
  $region77: #{forward.1} parent=0
    _
  %s12 = ssub.s32 1, %s10
  %s13 = scalar_select 0, %s12, %s10
  $region1: #{forward.1} parent=0
    #allocation3 [shape = 'u8[1024]{0}', space=vmem, size = 0x400, scoped, tag = 'output window, operand 1']
    #allocation4 [shape = 's32[2]{0}', space=sflag, size = 0x8, scoped, tag = 'scoped memory for forward.1']
    %14 = vsyncpa [#allocation4], 0
    %s15 = scalar_lea.sflag [#allocation4], 1
    %16 = vsyncpa %s15, 0
    loop: start=0, step=1, limit=4
    $region2: #{forward.1} parent=1 // loop_pre_header
      _
    $region3: #{forward.1} parent=1 // loop_header
      %s18 = sphi 0, %s22
      %p19 = scmp.ge.s32.totalorder %s18, 4
      %s25 = sphi 0, %s37
      %s26 = sphi 0, %s33
      %s27 = sphi 0, %s25
      %s28 = sphi 0, %s26
      %s29 = sphi 0, %s27
      %s30 = sphi 0, %s28
      %s42 = sphi 0, %s44
      %s45 = sphi 0, %s42
      %s46 = sphi 0, %s45
      %s62 = sphi 0, %s46
      %s66 = sphi 0, %s66
      %s68 = sphi 0, %s66
      %s69 = sphi 0, %s68
      %s83 = sphi 0, %s69
      %s87 = sphi 0, %s87
      %s89 = sphi 0, %s87
      %s90 = sphi 0, %s89
      %s104 = sphi 0, %s90
      %s108 = sphi 0, %s108
      %s110 = sphi 0, %s108
      %s111 = sphi 0, %s110
      %s125 = sphi 0, %s111
      %s129 = sphi 0, %s129
      %s131 = sphi 0, %s129
      %s132 = sphi 0, %s131
      %s146 = sphi 0, %s132
      %s150 = sphi 0, %s150
      %s152 = sphi 0, %s150
      %s153 = sphi 0, %s152
      %s167 = sphi 0, %s153
      %s171 = sphi 0, %s171
      %s173 = sphi 0, %s171
      %s174 = sphi 0, %s173
      %s188 = sphi 0, %s174
      %s196 = sphi 0, %s198
      %s199 = sphi 0, %s196
      %s200 = sphi 0, %s199
      %s216 = sphi 0, %s200
      %s222 = sphi 0, %s224
      %s225 = sphi 0, %s222
      %s226 = sphi 0, %s225
      %s242 = sphi 0, %s226
    $region4: #{forward.1} parent=1 // loop_header_branch
      %21 = sbr.rel (%p19) target = $region8
    $region5: #{forward.1} parent=1 // loop_body
      %s23 = ssub.s32 %s18, 1
      %s24 = ssub.s32 %s18, 2
      %s31 = sadd.s32 1, %s26
      %p32 = scmp.ge.s32.totalorder %s31, 1
      %s33 = scalar_select %p32, 0, %s31
      %s34 = sadd.s32 1, %s25
      %s35 = scalar_select %p32, %s34, %s25
      %p36 = scmp.ge.s32.totalorder %s35, 2
      %s37 = scalar_select %p36, 0, %s35
      %s38 = ssub.s32 %s25, %s37
      %s39 = ssub.s32 %s26, %s33
      %s40 = sor.u32 %s38, %s39
      %p41 = scmp.eq.s32.totalorder %s40, 0
      %s43 = sadd.s32 %s42, 1
      %s44 = scalar_select %p41, %s42, %s43
      %p47 = pneg %p41
      %p48 = scmp.eq.s32.totalorder %s18, 1
      %p49 = por %p47, %p48
      %p50 = scmp.ne.s32.totalorder %s42, %s45
      %p51 = scmp.eq.s32.totalorder %s18, 0
      %p52 = por %p50, %p51
      %p53 = scmp.ne.s32.totalorder %s42, %s45
      %p54 = scmp.eq.s32.totalorder %s23, 1
      %p55 = por %p53, %p54
      %p56 = scmp.ne.s32.totalorder %s45, %s46
      %p57 = scmp.eq.s32.totalorder %s23, 0
      %p58 = por %p56, %p57
      %p59 = scmp.ne.s32.totalorder %s45, %s46
      %p60 = scmp.eq.s32.totalorder %s24, 1
      %p61 = por %p59, %p60
      %p63 = scmp.ne.s32.totalorder %s46, %s62
      %p64 = scmp.eq.s32.totalorder %s24, 0
      %p65 = por %p63, %p64
      %s67 = sadd.s32 %s66, 1
      %p70 = scmp.eq.s32.totalorder %s18, 1
      %p71 = scmp.ne.s32.totalorder %s66, %s68
      %p72 = scmp.eq.s32.totalorder %s18, 0
      %p73 = por %p71, %p72
      %p74 = scmp.ne.s32.totalorder %s66, %s68
      %p75 = scmp.eq.s32.totalorder %s23, 1
      %p76 = por %p74, %p75
      %p77 = scmp.ne.s32.totalorder %s68, %s69
      %p78 = scmp.eq.s32.totalorder %s23, 0
      %p79 = por %p77, %p78
      %p80 = scmp.ne.s32.totalorder %s68, %s69
      %p81 = scmp.eq.s32.totalorder %s24, 1
      %p82 = por %p80, %p81
      %p84 = scmp.ne.s32.totalorder %s69, %s83
      %p85 = scmp.eq.s32.totalorder %s24, 0
      %p86 = por %p84, %p85
      %s88 = sadd.s32 %s87, 1
      %p91 = scmp.eq.s32.totalorder %s18, 1
      %p92 = scmp.ne.s32.totalorder %s87, %s89
      %p93 = scmp.eq.s32.totalorder %s18, 0
      %p94 = por %p92, %p93
      %p95 = scmp.ne.s32.totalorder %s87, %s89
      %p96 = scmp.eq.s32.totalorder %s23, 1
      %p97 = por %p95, %p96
      %p98 = scmp.ne.s32.totalorder %s89, %s90
      %p99 = scmp.eq.s32.totalorder %s23, 0
      %p100 = por %p98, %p99
      %p101 = scmp.ne.s32.totalorder %s89, %s90
      %p102 = scmp.eq.s32.totalorder %s24, 1
      %p103 = por %p101, %p102
      %p105 = scmp.ne.s32.totalorder %s90, %s104
      %p106 = scmp.eq.s32.totalorder %s24, 0
      %p107 = por %p105, %p106
      %s109 = sadd.s32 %s108, 1
      %p112 = scmp.eq.s32.totalorder %s18, 1
      %p113 = scmp.ne.s32.totalorder %s108, %s110
      %p114 = scmp.eq.s32.totalorder %s18, 0
      %p115 = por %p113, %p114
      %p116 = scmp.ne.s32.totalorder %s108, %s110
      %p117 = scmp.eq.s32.totalorder %s23, 1
      %p118 = por %p116, %p117
      %p119 = scmp.ne.s32.totalorder %s110, %s111
      %p120 = scmp.eq.s32.totalorder %s23, 0
      %p121 = por %p119, %p120
      %p122 = scmp.ne.s32.totalorder %s110, %s111
      %p123 = scmp.eq.s32.totalorder %s24, 1
      %p124 = por %p122, %p123
      %p126 = scmp.ne.s32.totalorder %s111, %s125
      %p127 = scmp.eq.s32.totalorder %s24, 0
      %p128 = por %p126, %p127
      %s130 = sadd.s32 %s129, 1
      %p133 = scmp.eq.s32.totalorder %s18, 1
      %p134 = scmp.ne.s32.totalorder %s129, %s131
      %p135 = scmp.eq.s32.totalorder %s18, 0
      %p136 = por %p134, %p135
      %p137 = scmp.ne.s32.totalorder %s129, %s131
      %p138 = scmp.eq.s32.totalorder %s23, 1
      %p139 = por %p137, %p138
      %p140 = scmp.ne.s32.totalorder %s131, %s132
      %p141 = scmp.eq.s32.totalorder %s23, 0
      %p142 = por %p140, %p141
      %p143 = scmp.ne.s32.totalorder %s131, %s132
      %p144 = scmp.eq.s32.totalorder %s24, 1
      %p145 = por %p143, %p144
      %p147 = scmp.ne.s32.totalorder %s132, %s146
      %p148 = scmp.eq.s32.totalorder %s24, 0
      %p149 = por %p147, %p148
      %s151 = sadd.s32 %s150, 1
      %p154 = scmp.eq.s32.totalorder %s18, 1
      %p155 = scmp.ne.s32.totalorder %s150, %s152
      %p156 = scmp.eq.s32.totalorder %s18, 0
      %p157 = por %p155, %p156
      %p158 = scmp.ne.s32.totalorder %s150, %s152
      %p159 = scmp.eq.s32.totalorder %s23, 1
      %p160 = por %p158, %p159
      %p161 = scmp.ne.s32.totalorder %s152, %s153
      %p162 = scmp.eq.s32.totalorder %s23, 0
      %p163 = por %p161, %p162
      %p164 = scmp.ne.s32.totalorder %s152, %s153
      %p165 = scmp.eq.s32.totalorder %s24, 1
      %p166 = por %p164, %p165
      %p168 = scmp.ne.s32.totalorder %s153, %s167
      %p169 = scmp.eq.s32.totalorder %s24, 0
      %p170 = por %p168, %p169
      %s172 = sadd.s32 %s171, 1
      %p175 = scmp.eq.s32.totalorder %s18, 1
      %p176 = scmp.ne.s32.totalorder %s171, %s173
      %p177 = scmp.eq.s32.totalorder %s18, 0
      %p178 = por %p176, %p177
      %p179 = scmp.ne.s32.totalorder %s171, %s173
      %p180 = scmp.eq.s32.totalorder %s23, 1
      %p181 = por %p179, %p180
      %p182 = scmp.ne.s32.totalorder %s173, %s174
      %p183 = scmp.eq.s32.totalorder %s23, 0
      %p184 = por %p182, %p183
      %p185 = scmp.ne.s32.totalorder %s173, %s174
      %p186 = scmp.eq.s32.totalorder %s24, 1
      %p187 = por %p185, %p186
      %p189 = scmp.ne.s32.totalorder %s174, %s188
      %p190 = scmp.eq.s32.totalorder %s24, 0
      %p191 = por %p189, %p190
      %s192 = ssub.s32 %s25, %s37
      %s193 = ssub.s32 %s26, %s33
      %s194 = sor.u32 %s192, %s193
      %p195 = scmp.eq.s32.totalorder %s194, 0
      %s197 = sadd.s32 %s196, 1
      %s198 = scalar_select %p195, %s196, %s197
      %p201 = pneg %p195
      %p202 = scmp.eq.s32.totalorder %s18, 1
      %p203 = por %p201, %p202
      %p204 = scmp.ne.s32.totalorder %s196, %s199
      %p205 = scmp.eq.s32.totalorder %s18, 0
      %p206 = por %p204, %p205
      %p207 = scmp.ne.s32.totalorder %s196, %s199
      %p208 = scmp.eq.s32.totalorder %s23, 1
      %p209 = por %p207, %p208
      %p210 = scmp.ne.s32.totalorder %s199, %s200
      %p211 = scmp.eq.s32.totalorder %s23, 0
      %p212 = por %p210, %p211
      %p213 = scmp.ne.s32.totalorder %s199, %s200
      %p214 = scmp.eq.s32.totalorder %s24, 1
      %p215 = por %p213, %p214
      %p217 = scmp.ne.s32.totalorder %s200, %s216
      %p218 = scmp.eq.s32.totalorder %s24, 0
      %p219 = por %p217, %p218
      %s220 = ssub.s32 %s25, %s37
      %p221 = scmp.eq.s32.totalorder %s220, 0
      %s223 = sadd.s32 %s222, 1
      %s224 = scalar_select %p221, %s222, %s223
      %p227 = pneg %p221
      %p228 = scmp.eq.s32.totalorder %s18, 1
      %p229 = por %p227, %p228
      %p230 = scmp.ne.s32.totalorder %s222, %s225
      %p231 = scmp.eq.s32.totalorder %s18, 0
      %p232 = por %p230, %p231
      %p233 = scmp.ne.s32.totalorder %s222, %s225
      %p234 = scmp.eq.s32.totalorder %s23, 1
      %p235 = por %p233, %p234
      %p236 = scmp.ne.s32.totalorder %s225, %s226
      %p237 = scmp.eq.s32.totalorder %s23, 0
      %p238 = por %p236, %p237
      %p239 = scmp.ne.s32.totalorder %s225, %s226
      %p240 = scmp.eq.s32.totalorder %s24, 1
      %p241 = por %p239, %p240
      %p243 = scmp.ne.s32.totalorder %s226, %s242
      %p244 = scmp.eq.s32.totalorder %s24, 0
      %p245 = por %p243, %p244
      %p246 = scmp.le.s32.totalorder 1, %s18
      %p247 = scmp.lt.s32.totalorder %s18, 3
      %p248 = pnand %p246, %p247
      %p249 = pneg %p248
      // Predicated region
      $region9: #{forward.1} parent=5 // pred_check
        _
      $region10: #{forward.1} parent=5 // pred_check_branch
        %251 = sbr.rel (%p248) target = $region12
      $region11: #{forward.1} parent=5 // pred_region
        %s252 = ssub.s32 %s18, 1
        // Predicated region
        $region13: #{forward.1} parent=11 // pred_check
          %p253 = pneg %p79
        $region14: #{forward.1} parent=11 // pred_check_branch
          %255 = sbr.rel (%p253) target = $region16
        $region15: #{forward.1} parent=11 // pred_region
          _
        $region16: #{forward.1} parent=11 // pred_fallthru
          _
        // Predicated region
        $region17: #{forward.1} parent=11 // pred_check
          %p256 = pneg %p100
        $region18: #{forward.1} parent=11 // pred_check_branch
          %258 = sbr.rel (%p256) target = $region20
        $region19: #{forward.1} parent=11 // pred_region
          _
        $region20: #{forward.1} parent=11 // pred_fallthru
          _
        // Predicated region
        $region21: #{forward.1} parent=11 // pred_check
          %p259 = pneg %p121
        $region22: #{forward.1} parent=11 // pred_check_branch
          %261 = sbr.rel (%p259) target = $region24
        $region23: #{forward.1} parent=11 // pred_region
          _
        $region24: #{forward.1} parent=11 // pred_fallthru
          _
        // Predicated region
        $region25: #{forward.1} parent=11 // pred_check
          %p262 = pneg %p142
        $region26: #{forward.1} parent=11 // pred_check_branch
          %264 = sbr.rel (%p262) target = $region28
        $region27: #{forward.1} parent=11 // pred_region
          _
        $region28: #{forward.1} parent=11 // pred_fallthru
          _
        // Predicated region
        $region29: #{forward.1} parent=11 // pred_check
          %p265 = pneg %p163
        $region30: #{forward.1} parent=11 // pred_check_branch
          %267 = sbr.rel (%p265) target = $region32
        $region31: #{forward.1} parent=11 // pred_region
          _
        $region32: #{forward.1} parent=11 // pred_fallthru
          _
        // Predicated region
        $region33: #{forward.1} parent=11 // pred_check
          %p268 = pneg %p184
        $region34: #{forward.1} parent=11 // pred_check_branch
          %270 = sbr.rel (%p268) target = $region36
        $region35: #{forward.1} parent=11 // pred_region
          _
        $region36: #{forward.1} parent=11 // pred_fallthru
          _
      $region12: #{forward.1} parent=5 // pred_fallthru
        _
      %p271 = scmp.lt.s32.totalorder %s18, 2
      // Predicated region
      $region37: #{forward.1} parent=5 // pred_check
        %p272 = pneg %p271
      $region38: #{forward.1} parent=5 // pred_check_branch
        %274 = sbr.rel (%p272) target = $region40
      $region39: #{forward.1} parent=5 // pred_region
        // Predicated region
        $region41: #{forward.1} parent=39 // pred_check
          %p275 = pneg %p52
        $region42: #{forward.1} parent=39 // pred_check_branch
          %277 = sbr.rel (%p275) target = $region44
        $region43: #{forward.1} parent=39 // pred_region
          %s278 = smul.u32 32, %s26
          %p279 = scmp.lt.s32.totalorder %s25, 1
          %s280 = scalar_select %p279, %s25, 1
          %p281 = scmp.lt.s32.totalorder %s278, 31
          %s282 = scalar_select %p281, %s278, 31
          %s283 = smul.addr %s280, 32
          %s284 = sadd.s32 %s282, %s283
          %s285 = smul.addr %s284, 4
          %s286 = scalar_lea.vmem %s0, %s285
          %s287 = smul.u32 32, %s26
        $region44: #{forward.1} parent=39 // pred_fallthru
          _
      $region40: #{forward.1} parent=5 // pred_fallthru
        _
      %p288 = scmp.le.s32.totalorder 1, %s18
      %p289 = scmp.lt.s32.totalorder %s18, 3
      %p290 = pnand %p288, %p289
      %p291 = pneg %p290
      // Predicated region
      $region45: #{forward.1} parent=5 // pred_check
        _
      $region46: #{forward.1} parent=5 // pred_check_branch
        %293 = sbr.rel (%p290) target = $region48
      $region47: #{forward.1} parent=5 // pred_region
        %s294 = ssub.s32 %s18, 1
        %s295 = smul.u32 32, %s28
        %p296 = scmp.lt.s32.totalorder %s27, 1
        %s297 = scalar_select %p296, %s27, 1
        %p298 = scmp.lt.s32.totalorder %s295, 31
        %s299 = scalar_select %p298, %s295, 31
        %s300 = smul.addr %s297, 32
        %s301 = sadd.s32 %s299, %s300
        %s302 = smul.addr %s301, 4
        %s303 = scalar_lea.vmem %s0, %s302
        %p304 = pneg %p58
        %p305 = pneg %p55
        %p306 = pneg %p79
        %p307 = pneg %p76
        %p308 = pneg %p100
        %p309 = pneg %p97
        %p310 = pneg %p121
        %p311 = pneg %p118
        %p312 = pneg %p142
        %p313 = pneg %p139
        %p314 = pneg %p163
        %p315 = pneg %p160
        %p316 = pneg %p184
        %p317 = pneg %p181
        %p318 = pneg %p212
        %p319 = pneg %p209
        %s320 = smul.u32 2, %s28
        %p321 = scmp.lt.s32.totalorder %s27, 1
        %s322 = scalar_select %p321, %s27, 1
        %p323 = scmp.lt.s32.totalorder %s320, 1
        %s324 = scalar_select %p323, %s320, 1
        %s325 = smul.addr %s322, 4
        %s326 = sadd.s32 %s324, %s325
        %s327 = smul.addr %s326, 4
        %s328 = scalar_lea.vmem %s7, %s327
        %p329 = pneg %p238
        %p330 = pneg %p235
        %s331 = sand.u32 %s225, 1
        %s332 = scalar_lea.sflag [#allocation4], %s331
        %s333 = sand.u32 %s225, 1
        %s334 = scalar_lea.vmem [#allocation3], %s333
        %s335 = smul.u32 32, %s28
        %p336 = scmp.lt.s32.totalorder %s27, 1
        %s337 = scalar_select %p336, %s27, 1
        %p338 = scmp.lt.s32.totalorder %s335, 31
        %s339 = scalar_select %p338, %s335, 31
        %s340 = smul.addr %s337, 32
        %s341 = sadd.s32 %s339, %s340
        %s342 = smul.addr %s341, 4
        %s343 = scalar_lea.vmem %s0, %s342
        %s344 = smul.u32 32, %s28
        %s345 = smul.u32 2, %s28
        %p346 = scmp.lt.s32.totalorder %s27, 1
        %s347 = scalar_select %p346, %s27, 1
        %p348 = scmp.lt.s32.totalorder %s345, 1
        %s349 = scalar_select %p348, %s345, 1
        %s350 = smul.addr %s347, 4
        %s351 = sadd.s32 %s349, %s350
        %s352 = smul.addr %s351, 4
        %s353 = scalar_lea.vmem %s7, %s352
        %s354 = smul.u32 2, %s28
        %p357 = scmp.eq.s32.totalorder %s28, 0
        // Predicated region
        $region49: #{forward.1} parent=47 // pred_check
          %p358 = pneg %p357
        $region50: #{forward.1} parent=47 // pred_check_branch
          %360 = sbr.rel (%p358) target = $region52
        $region51: #{forward.1} parent=47 // pred_region
          %361 = vst [vmem:[#allocation2] sm:$0x1] 0.0
        $region52: #{forward.1} parent=47 // pred_fallthru
          _
        %v362 = vld [vmem:[%s343] sm:$0xf]
        %v363 = vld [vmem:[%s343 + $0x4] sm:$0xf]
        %v364 = vld [vmem:[%s343 + $0x8] sm:$0xf]
        %v365 = vld [vmem:[%s343 + $0xc] sm:$0xf]
        %v366 = vld [vmem:[%s343 + $0x10] sm:$0xf]
        %v367 = vld [vmem:[%s343 + $0x14] sm:$0xf]
        %v368 = vld [vmem:[%s343 + $0x18] sm:$0xf]
        %v369 = vld [vmem:[%s343 + $0x1c] sm:$0xf]
        %v370 = vld [vmem:[%s343 + $0x20] sm:$0xf]
        %v371 = vld [vmem:[%s343 + $0x24] sm:$0xf]
        %v372 = vld [vmem:[%s343 + $0x28] sm:$0xf]
        %v373 = vld [vmem:[%s343 + $0x2c] sm:$0xf]
        %v374 = vld [vmem:[%s343 + $0x30] sm:$0xf]
        %v375 = vld [vmem:[%s343 + $0x34] sm:$0xf]
        %v376 = vld [vmem:[%s343 + $0x38] sm:$0xf]
        %v377 = vld [vmem:[%s343 + $0x3c] sm:$0xf]
        %v378 = vld [vmem:[%s343 + $0x40] sm:$0xf]
        %v379 = vld [vmem:[%s343 + $0x44] sm:$0xf]
        %v380 = vld [vmem:[%s343 + $0x48] sm:$0xf]
        %v381 = vld [vmem:[%s343 + $0x4c] sm:$0xf]
        %v382 = vld [vmem:[%s343 + $0x50] sm:$0xf]
        %v383 = vld [vmem:[%s343 + $0x54] sm:$0xf]
        %v384 = vld [vmem:[%s343 + $0x58] sm:$0xf]
        %v385 = vld [vmem:[%s343 + $0x5c] sm:$0xf]
        %v386 = vld [vmem:[%s343 + $0x60] sm:$0xf]
        %v387 = vld [vmem:[%s343 + $0x64] sm:$0xf]
        %v388 = vld [vmem:[%s343 + $0x68] sm:$0xf]
        %v389 = vld [vmem:[%s343 + $0x6c] sm:$0xf]
        %v390 = vld [vmem:[%s343 + $0x70] sm:$0xf]
        %v391 = vld [vmem:[%s343 + $0x74] sm:$0xf]
        %v392 = vld [vmem:[%s343 + $0x78] sm:$0xf]
        %v393 = vld [vmem:[%s343 + $0x7c] sm:$0xf]
        %v394 = vld [vmem:[%s1] sm:$0xf]
        %v395 = vld [vmem:[%s1 + $0x4] sm:$0xf]
        %v396 = vld [vmem:[%s1 + $0x8] sm:$0xf]
        %v397 = vld [vmem:[%s1 + $0xc] sm:$0xf]
        %v398 = vld [vmem:[%s2] sm:$0x1]
        %v400 = vlaneseq
        %v401 = vshrl.u32 %v400, 7
        %v402 = vsub.s32 0, %v401
        %v403 = vrot.slane %v398, %v402
        %v437 = vunpack.c.l.b16 %v362
        %v438 = vunpack.c.l.b16 %v363
        %v439 = vunpack.c.l.b16 %v364
        %v440 = vunpack.c.l.b16 %v365
        %v441 = vunpack.c.l.b16 %v366
        %v442 = vunpack.c.l.b16 %v367
        %v443 = vunpack.c.l.b16 %v368
        %v444 = vunpack.c.l.b16 %v369
        %v445 = vunpack.c.l.b16 %v370
        %v446 = vunpack.c.l.b16 %v371
        %v447 = vunpack.c.l.b16 %v372
        %v448 = vunpack.c.l.b16 %v373
        %v449 = vunpack.c.l.b16 %v374
        %v450 = vunpack.c.l.b16 %v375
        %v451 = vunpack.c.l.b16 %v376
        %v452 = vunpack.c.l.b16 %v377
        %v453 = vunpack.c.l.b16 %v378
        %v454 = vunpack.c.l.b16 %v379
        %v455 = vunpack.c.l.b16 %v380
        %v456 = vunpack.c.l.b16 %v381
        %v457 = vunpack.c.l.b16 %v382
        %v458 = vunpack.c.l.b16 %v383
        %v459 = vunpack.c.l.b16 %v384
        %v460 = vunpack.c.l.b16 %v385
        %v461 = vunpack.c.l.b16 %v386
        %v462 = vunpack.c.l.b16 %v387
        %v463 = vunpack.c.l.b16 %v388
        %v464 = vunpack.c.l.b16 %v389
        %v465 = vunpack.c.l.b16 %v390
        %v466 = vunpack.c.l.b16 %v391
        %v467 = vunpack.c.l.b16 %v392
        %v468 = vunpack.c.l.b16 %v393
        %v469 = vpack.c.b16 %v438, %v437
        %v470 = vpack.c.b16 %v440, %v439
        %v471 = vpack.c.b16 %v442, %v441
        %v472 = vpack.c.b16 %v444, %v443
        %v473 = vpack.c.b16 %v446, %v445
        %v474 = vpack.c.b16 %v448, %v447
        %v475 = vpack.c.b16 %v450, %v449
        %v476 = vpack.c.b16 %v452, %v451
        %v477 = vpack.c.b16 %v454, %v453
        %v478 = vpack.c.b16 %v456, %v455
        %v479 = vpack.c.b16 %v458, %v457
        %v480 = vpack.c.b16 %v460, %v459
        %v481 = vpack.c.b16 %v462, %v461
        %v482 = vpack.c.b16 %v464, %v463
        %v483 = vpack.c.b16 %v466, %v465
        %v484 = vpack.c.b16 %v468, %v467
        %v489 = vunpack.c.l.b16 %v394
        %v490 = vunpack.c.l.b16 %v395
        %v491 = vunpack.c.l.b16 %v396
        %v492 = vunpack.c.l.b16 %v397
        %v493 = vpack.c.b16 %v490, %v489
        %v494 = vpack.c.b16 %v492, %v491
        %vm497 = vcmask 261120
        %v499 = vsel %vm497, %v469, 0
        %v502 = vsel %vm497, %v470, 0
        %v505 = vsel %vm497, %v471, 0
        %v508 = vsel %vm497, %v472, 0
        %v511 = vsel %vm497, %v473, 0
        %v514 = vsel %vm497, %v474, 0
        %v517 = vsel %vm497, %v475, 0
        %v520 = vsel %vm497, %v476, 0
        %v523 = vsel %vm497, %v477, 0
        %v526 = vsel %vm497, %v478, 0
        %v529 = vsel %vm497, %v479, 0
        %v532 = vsel %vm497, %v480, 0
        %v535 = vsel %vm497, %v481, 0
        %v538 = vsel %vm497, %v482, 0
        %v541 = vsel %vm497, %v483, 0
        %v544 = vsel %vm497, %v484, 0
        %546 = vmatprep.subr.bf16.mxu0 0
        %547 = vmatpush1.bf16.msra.mxu0 %v493
        %548 = vmatprep.subr.bf16.mxu0 0
        %549 = vmatpush1.bf16.msra.mxu0 %v494
        %550 = vmatprep.subr.bf16.mxu0 0
        %551 = vmatpush1.bf16.msra.mxu0 0
        %552 = vmatprep.subr.bf16.mxu0 0
        %553 = vmatpush1.bf16.msra.mxu0 0
        %554 = vmatprep.subr.bf16.mxu0 0
        %555 = vmatpush1.bf16.msra.mxu0 0
        %556 = vmatprep.subr.bf16.mxu0 0
        %557 = vmatpush1.bf16.msra.mxu0 0
        %558 = vmatprep.subr.bf16.mxu0 0
        %559 = vmatpush1.bf16.msra.mxu0 0
        %560 = vmatprep.subr.bf16.mxu0 0
        %561 = vmatpush1.bf16.msra.mxu0 0
        %562 = vmatprep.subr.bf16.mxu0 0
        %563 = vmatpush1.bf16.msra.mxu0 0
        %564 = vmatprep.subr.bf16.mxu0 0
        %565 = vmatpush1.bf16.msra.mxu0 0
        %566 = vmatprep.subr.bf16.mxu0 0
        %567 = vmatpush1.bf16.msra.mxu0 0
        %568 = vmatprep.subr.bf16.mxu0 0
        %569 = vmatpush1.bf16.msra.mxu0 0
        %570 = vmatprep.subr.bf16.mxu0 0
        %571 = vmatpush1.bf16.msra.mxu0 0
        %572 = vmatprep.subr.bf16.mxu0 0
        %573 = vmatpush1.bf16.msra.mxu0 0
        %574 = vmatprep.subr.bf16.mxu0 0
        %575 = vmatpush1.bf16.msra.mxu0 0
        %576 = vmatprep.subr.bf16.mxu0 0
        %577 = vmatpush1.bf16.msra.mxu0 0
        %578 = vmatprep.mubr.bf16.mxu0 0
        %579 = vmatmul.mubr.bf16.gmra.mrb[0].mxu0 %v499
        %v580 = vpop.f32.mrb[0].mxu0
        %v581 = vadd.f32 %v403, %v580
        %v582 = vpop.f32.mrb[0].mxu0
        %v583 = vpop.f32.mrb[0].mxu0
        %v584 = vadd.f32 %v403, %v583
        %v585 = vpop.f32.mrb[0].mxu0
        %586 = vmatprep.mubr.bf16.mxu0 0
        %587 = vmatmul.mubr.bf16.gmra.mrb[0].mxu0 %v502
        %v588 = vpop.f32.mrb[0].mxu0
        %v589 = vadd.f32 %v403, %v588
        %v590 = vpop.f32.mrb[0].mxu0
        %v591 = vpop.f32.mrb[0].mxu0
        %v592 = vadd.f32 %v403, %v591
        %v593 = vpop.f32.mrb[0].mxu0
        %594 = vmatprep.mubr.bf16.mxu0 0
        %595 = vmatmul.mubr.bf16.gmra.mrb[0].mxu0 %v505
        %v596 = vpop.f32.mrb[0].mxu0
        %v597 = vadd.f32 %v403, %v596
        %v598 = vpop.f32.mrb[0].mxu0
        %v599 = vpop.f32.mrb[0].mxu0
        %v600 = vadd.f32 %v403, %v599
        %v601 = vpop.f32.mrb[0].mxu0
        %602 = vmatprep.mubr.bf16.mxu0 0
        %603 = vmatmul.mubr.bf16.gmra.mrb[0].mxu0 %v508
        %v604 = vpop.f32.mrb[0].mxu0
        %v605 = vadd.f32 %v403, %v604
        %v606 = vpop.f32.mrb[0].mxu0
        %v607 = vpop.f32.mrb[0].mxu0
        %v608 = vadd.f32 %v403, %v607
        %v609 = vpop.f32.mrb[0].mxu0
        %610 = vmatprep.mubr.bf16.mxu0 0
        %611 = vmatmul.mubr.bf16.gmra.mrb[0].mxu0 %v511
        %v612 = vpop.f32.mrb[0].mxu0
        %v613 = vadd.f32 %v403, %v612
        %v614 = vpop.f32.mrb[0].mxu0
        %v615 = vpop.f32.mrb[0].mxu0
        %v616 = vadd.f32 %v403, %v615
        %v617 = vpop.f32.mrb[0].mxu0
        %618 = vmatprep.mubr.bf16.mxu0 0
        %619 = vmatmul.mubr.bf16.gmra.mrb[0].mxu0 %v514
        %v620 = vpop.f32.mrb[0].mxu0
        %v621 = vadd.f32 %v403, %v620
        %v622 = vpop.f32.mrb[0].mxu0
        %v623 = vpop.f32.mrb[0].mxu0
        %v624 = vadd.f32 %v403, %v623
        %v625 = vpop.f32.mrb[0].mxu0
        %626 = vmatprep.mubr.bf16.mxu0 0
        %627 = vmatmul.mubr.bf16.gmra.mrb[0].mxu0 %v517
        %v628 = vpop.f32.mrb[0].mxu0
        %v629 = vadd.f32 %v403, %v628
        %v630 = vpop.f32.mrb[0].mxu0
        %v631 = vpop.f32.mrb[0].mxu0
        %v632 = vadd.f32 %v403, %v631
        %v633 = vpop.f32.mrb[0].mxu0
        %634 = vmatprep.mubr.bf16.mxu0 0
        %635 = vmatmul.mubr.bf16.gmra.mrb[0].mxu0 %v520
        %v636 = vpop.f32.mrb[0].mxu0
        %v637 = vadd.f32 %v403, %v636
        %v638 = vpop.f32.mrb[0].mxu0
        %v639 = vpop.f32.mrb[0].mxu0
        %v640 = vadd.f32 %v403, %v639
        %v641 = vpop.f32.mrb[0].mxu0
        %642 = vmatprep.mubr.bf16.mxu0 0
        %643 = vmatmul.mubr.bf16.gmra.mrb[0].mxu0 %v523
        %v644 = vpop.f32.mrb[0].mxu0
        %v645 = vadd.f32 %v403, %v644
        %v646 = vpop.f32.mrb[0].mxu0
        %v647 = vpop.f32.mrb[0].mxu0
        %v648 = vadd.f32 %v403, %v647
        %v649 = vpop.f32.mrb[0].mxu0
        %650 = vmatprep.mubr.bf16.mxu0 0
        %651 = vmatmul.mubr.bf16.gmra.mrb[0].mxu0 %v526
        %v652 = vpop.f32.mrb[0].mxu0
        %v653 = vadd.f32 %v403, %v652
        %v654 = vpop.f32.mrb[0].mxu0
        %v655 = vpop.f32.mrb[0].mxu0
        %v656 = vadd.f32 %v403, %v655
        %v657 = vpop.f32.mrb[0].mxu0
        %658 = vmatprep.mubr.bf16.mxu0 0
        %659 = vmatmul.mubr.bf16.gmra.mrb[0].mxu0 %v529
        %v660 = vpop.f32.mrb[0].mxu0
        %v661 = vadd.f32 %v403, %v660
        %v662 = vpop.f32.mrb[0].mxu0
        %v663 = vpop.f32.mrb[0].mxu0
        %v664 = vadd.f32 %v403, %v663
        %v665 = vpop.f32.mrb[0].mxu0
        %666 = vmatprep.mubr.bf16.mxu0 0
        %667 = vmatmul.mubr.bf16.gmra.mrb[0].mxu0 %v532
        %v668 = vpop.f32.mrb[0].mxu0
        %v669 = vadd.f32 %v403, %v668
        %v670 = vpop.f32.mrb[0].mxu0
        %v671 = vpop.f32.mrb[0].mxu0
        %v672 = vadd.f32 %v403, %v671
        %v673 = vpop.f32.mrb[0].mxu0
        %674 = vmatprep.mubr.bf16.mxu0 0
        %675 = vmatmul.mubr.bf16.gmra.mrb[0].mxu0 %v535
        %v676 = vpop.f32.mrb[0].mxu0
        %v677 = vadd.f32 %v403, %v676
        %v678 = vpop.f32.mrb[0].mxu0
        %v679 = vpop.f32.mrb[0].mxu0
        %v680 = vadd.f32 %v403, %v679
        %v681 = vpop.f32.mrb[0].mxu0
        %682 = vmatprep.mubr.bf16.mxu0 0
        %683 = vmatmul.mubr.bf16.gmra.mrb[0].mxu0 %v538
        %v684 = vpop.f32.mrb[0].mxu0
        %v685 = vadd.f32 %v403, %v684
        %v686 = vpop.f32.mrb[0].mxu0
        %v687 = vpop.f32.mrb[0].mxu0
        %v688 = vadd.f32 %v403, %v687
        %v689 = vpop.f32.mrb[0].mxu0
        %690 = vmatprep.mubr.bf16.mxu0 0
        %691 = vmatmul.mubr.bf16.gmra.mrb[0].mxu0 %v541
        %v692 = vpop.f32.mrb[0].mxu0
        %v693 = vadd.f32 %v403, %v692
        %v694 = vpop.f32.mrb[0].mxu0
        %v695 = vpop.f32.mrb[0].mxu0
        %v696 = vadd.f32 %v403, %v695
        %v697 = vpop.f32.mrb[0].mxu0
        %698 = vmatprep.mubr.bf16.mxu0 0
        %699 = vmatmul.mubr.bf16.gmra.mrb[0].mxu0 %v544
        %v700 = vpop.f32.mrb[0].mxu0
        %v701 = vadd.f32 %v403, %v700
        %v702 = vpop.f32.mrb[0].mxu0
        %v703 = vpop.f32.mrb[0].mxu0
        %v704 = vadd.f32 %v403, %v703
        %v705 = vpop.f32.mrb[0].mxu0
        %706 = vdwg.mxu0
        %v707 = vmax.f32 %v581, 0.0
        %v708 = vmax.f32 %v584, 0.0
        %v709 = vmax.f32 %v589, 0.0
        %v710 = vmax.f32 %v592, 0.0
        %v711 = vmax.f32 %v597, 0.0
        %v712 = vmax.f32 %v600, 0.0
        %v713 = vmax.f32 %v605, 0.0
        %v714 = vmax.f32 %v608, 0.0
        %v715 = vmax.f32 %v613, 0.0
        %v716 = vmax.f32 %v616, 0.0
        %v717 = vmax.f32 %v621, 0.0
        %v718 = vmax.f32 %v624, 0.0
        %v719 = vmax.f32 %v629, 0.0
        %v720 = vmax.f32 %v632, 0.0
        %v721 = vmax.f32 %v637, 0.0
        %v722 = vmax.f32 %v640, 0.0
        %v723 = vmax.f32 %v645, 0.0
        %v724 = vmax.f32 %v648, 0.0
        %v725 = vmax.f32 %v653, 0.0
        %v726 = vmax.f32 %v656, 0.0
        %v727 = vmax.f32 %v661, 0.0
        %v728 = vmax.f32 %v664, 0.0
        %v729 = vmax.f32 %v669, 0.0
        %v730 = vmax.f32 %v672, 0.0
        %v731 = vmax.f32 %v677, 0.0
        %v732 = vmax.f32 %v680, 0.0
        %v733 = vmax.f32 %v685, 0.0
        %v734 = vmax.f32 %v688, 0.0
        %v735 = vmax.f32 %v693, 0.0
        %v736 = vmax.f32 %v696, 0.0
        %v737 = vmax.f32 %v701, 0.0
        %v738 = vmax.f32 %v704, 0.0
        %v739 = vpack.c.bf16 %v708, %v707
        %v740 = vpack.c.bf16 %v710, %v709
        %v741 = vpack.c.bf16 %v712, %v711
        %v742 = vpack.c.bf16 %v714, %v713
        %v743 = vpack.c.bf16 %v716, %v715
        %v744 = vpack.c.bf16 %v718, %v717
        %v745 = vpack.c.bf16 %v720, %v719
        %v746 = vpack.c.bf16 %v722, %v721
        %v747 = vpack.c.bf16 %v724, %v723
        %v748 = vpack.c.bf16 %v726, %v725
        %v749 = vpack.c.bf16 %v728, %v727
        %v750 = vpack.c.bf16 %v730, %v729
        %v751 = vpack.c.bf16 %v732, %v731
        %v752 = vpack.c.bf16 %v734, %v733
        %v753 = vpack.c.bf16 %v736, %v735
        %v754 = vpack.c.bf16 %v738, %v737
        %v755 = vld [vmem:[%s3] sm:$0xf]
        %v756 = vld [vmem:[%s3 + $0x4] sm:$0xf]
        %v757 = vld [vmem:[%s4] sm:$0xff]
        %v758 = vld [vmem:[%s4 + $0x8] sm:$0xff]
        %760 = vset.pattern.permute.xlu0 0
        %761 = vperm.xlu0 %760, %v757
        %v762 = vpop.permute.xlu0 %761
        %765 = vset.pattern.permute.xlu0 0
        %766 = vperm.xlu0 %765, %v758
        %v767 = vpop.permute.xlu0 %766
        %v771 = vunpack.c.l.b16 %v755
        %v772 = vunpack.c.l.b16 %v756
        %v773 = vpack.c.b16 %v772, %v771
        %775 = vmatprep.subr.bf16.mxu0 0
        %776 = vmatpush1.bf16.xpose.msra.mxu0 %v739
        %777 = vmatprep.subr.bf16.mxu0 0
        %778 = vmatpush1.bf16.xpose.msra.mxu0 %v740
        %779 = vmatprep.subr.bf16.mxu0 0
        %780 = vmatpush1.bf16.xpose.msra.mxu0 %v741
        %781 = vmatprep.subr.bf16.mxu0 0
        %782 = vmatpush1.bf16.xpose.msra.mxu0 %v742
        %783 = vmatprep.subr.bf16.mxu0 0
        %784 = vmatpush1.bf16.xpose.msra.mxu0 %v743
        %785 = vmatprep.subr.bf16.mxu0 0
        %786 = vmatpush1.bf16.xpose.msra.mxu0 %v744
        %787 = vmatprep.subr.bf16.mxu0 0
        %788 = vmatpush1.bf16.xpose.msra.mxu0 %v745
        %789 = vmatprep.subr.bf16.mxu0 0
        %790 = vmatpush1.bf16.xpose.msra.mxu0 %v746
        %791 = vmatprep.subr.bf16.mxu0 0
        %792 = vmatpush1.bf16.xpose.msra.mxu0 %v747
        %793 = vmatprep.subr.bf16.mxu0 0
        %794 = vmatpush1.bf16.xpose.msra.mxu0 %v748
        %795 = vmatprep.subr.bf16.mxu0 0
        %796 = vmatpush1.bf16.xpose.msra.mxu0 %v749
        %797 = vmatprep.subr.bf16.mxu0 0
        %798 = vmatpush1.bf16.xpose.msra.mxu0 %v750
        %799 = vmatprep.subr.bf16.mxu0 0
        %800 = vmatpush1.bf16.xpose.msra.mxu0 %v751
        %801 = vmatprep.subr.bf16.mxu0 0
        %802 = vmatpush1.bf16.xpose.msra.mxu0 %v752
        %803 = vmatprep.subr.bf16.mxu0 0
        %804 = vmatpush1.bf16.xpose.msra.mxu0 %v753
        %805 = vmatprep.subr.bf16.mxu0 0
        %806 = vmatpush1.bf16.xpose.msra.mxu0 %v754
        %807 = vmatprep.mubr.bf16.mxu0 0
        %808 = vmatmul.mubr.bf16.gmra.mrb[0].mxu0 %v773
        %v809 = vpop.f32.mrb[0].mxu0
        %v810 = vadd.f32 %v762, %v809
        %v811 = vpop.f32.mrb[0].mxu0
        %v812 = vadd.f32 %v762, %v811
        %v813 = vpop.f32.mrb[0].mxu0
        %v814 = vadd.f32 %v767, %v813
        %v815 = vpop.f32.mrb[0].mxu0
        %v816 = vadd.f32 %v767, %v815
        %817 = vdwg.mxu0
        %v818 = vpack.c.bf16 %v814, %v810
        %v819 = vpack.c.bf16 %v816, %v812
        %v822 = vunpack.c.l.b16 %v818
        %v823 = vunpack.c.l.b16 %v819
        %v824 = vunpack.c.h.b16 %v818
        %v825 = vunpack.c.h.b16 %v819
        %v826 = vpack.c.b16 %v823, %v822
        %v827 = vpack.c.b16 %v825, %v824
        %830 = vst [vmem:[%s353] sm:$0xff] %v826
        %831 = vst [vmem:[%s353 + $0x8] sm:$0xff] %v827
        %v832 = vld [vmem:[#allocation2] sm:$0x1]
        %833 = vmatprep.subr.bf16.mxu0 0
        %834 = vmatpush1.bf16.msra.mxu0 %v739
        %835 = vmatprep.subr.bf16.mxu0 0
        %836 = vmatpush1.bf16.msra.mxu0 %v740
        %837 = vmatprep.subr.bf16.mxu0 0
        %838 = vmatpush1.bf16.msra.mxu0 %v741
        %839 = vmatprep.subr.bf16.mxu0 0
        %840 = vmatpush1.bf16.msra.mxu0 %v742
        %841 = vmatprep.subr.bf16.mxu0 0
        %842 = vmatpush1.bf16.msra.mxu0 %v743
        %843 = vmatprep.subr.bf16.mxu0 0
        %844 = vmatpush1.bf16.msra.mxu0 %v744
        %845 = vmatprep.subr.bf16.mxu0 0
        %846 = vmatpush1.bf16.msra.mxu0 %v745
        %847 = vmatprep.subr.bf16.mxu0 0
        %848 = vmatpush1.bf16.msra.mxu0 %v746
        %849 = vmatprep.subr.bf16.mxu0 0
        %850 = vmatpush1.bf16.msra.mxu0 %v747
        %851 = vmatprep.subr.bf16.mxu0 0
        %852 = vmatpush1.bf16.msra.mxu0 %v748
        %853 = vmatprep.subr.bf16.mxu0 0
        %854 = vmatpush1.bf16.msra.mxu0 %v749
        %855 = vmatprep.subr.bf16.mxu0 0
        %856 = vmatpush1.bf16.msra.mxu0 %v750
        %857 = vmatprep.subr.bf16.mxu0 0
        %858 = vmatpush1.bf16.msra.mxu0 %v751
        %859 = vmatprep.subr.bf16.mxu0 0
        %860 = vmatpush1.bf16.msra.mxu0 %v752
        %861 = vmatprep.subr.bf16.mxu0 0
        %862 = vmatpush1.bf16.msra.mxu0 %v753
        %863 = vmatprep.subr.bf16.mxu0 0
        %864 = vmatpush1.bf16.msra.mxu0 %v754
        %865 = vmatprep.mubr.bf16.mxu0 1065369472
        %866 = vmatmul.mubr.bf16.gmra.mrb[0].mxu0 1065369472
        %v867 = vpop.f32.mrb[0].mxu0
        %v868 = vadd.f32 0.0, %v867
        %v869 = vpop.f32.mrb[0].mxu0
        %v870 = vpop.f32.mrb[0].mxu0
        %v871 = vpop.f32.mrb[0].mxu0
        %872 = vdwg.mxu0
        %v873 = vadd.f32 %v832, %v868
        %874 = vst [vmem:[#allocation2] sm:$0x1] %v873
        // Predicated region
        $region53: #{forward.1} parent=47 // pred_check
          %p875 = pneg %p357
        $region54: #{forward.1} parent=47 // pred_check_branch
          %877 = sbr.rel (%p875) target = $region56
        $region55: #{forward.1} parent=47 // pred_region
          %v878 = vld [vmem:[#allocation2] sm:$0x1]
          %v879 = vmul.f32 %v878, 0.00390625
          %v880 = vpack.c.bf16 %v879, %v879
          %v881 = vld [vmem:[%s5] sm:$0xf]
          %v882 = vld [vmem:[%s5 + $0x4] sm:$0xf]
          %v883 = vld [vmem:[%s5 + $0x8] sm:$0xf]
          %v884 = vld [vmem:[%s5 + $0xc] sm:$0xf]
          %v885 = vld [vmem:[%s5 + $0x10] sm:$0xf]
          %v886 = vld [vmem:[%s5 + $0x14] sm:$0xf]
          %v887 = vld [vmem:[%s5 + $0x18] sm:$0xf]
          %v888 = vld [vmem:[%s5 + $0x1c] sm:$0xf]
          %v889 = vld [vmem:[%s5 + $0x20] sm:$0xf]
          %v890 = vld [vmem:[%s5 + $0x24] sm:$0xf]
          %v891 = vld [vmem:[%s5 + $0x28] sm:$0xf]
          %v892 = vld [vmem:[%s5 + $0x2c] sm:$0xf]
          %v893 = vld [vmem:[%s5 + $0x30] sm:$0xf]
          %v894 = vld [vmem:[%s5 + $0x34] sm:$0xf]
          %v895 = vld [vmem:[%s5 + $0x38] sm:$0xf]
          %v896 = vld [vmem:[%s5 + $0x3c] sm:$0xf]
          %v897 = vld [vmem:[%s6] sm:$0x1]
          %v914 = vunpack.c.l.b16 %v881
          %v915 = vunpack.c.l.b16 %v882
          %v916 = vunpack.c.l.b16 %v883
          %v917 = vunpack.c.l.b16 %v884
          %v918 = vunpack.c.l.b16 %v885
          %v919 = vunpack.c.l.b16 %v886
          %v920 = vunpack.c.l.b16 %v887
          %v921 = vunpack.c.l.b16 %v888
          %v922 = vunpack.c.l.b16 %v889
          %v923 = vunpack.c.l.b16 %v890
          %v924 = vunpack.c.l.b16 %v891
          %v925 = vunpack.c.l.b16 %v892
          %v926 = vunpack.c.l.b16 %v893
          %v927 = vunpack.c.l.b16 %v894
          %v928 = vunpack.c.l.b16 %v895
          %v929 = vunpack.c.l.b16 %v896
          %v930 = vpack.c.b16 %v915, %v914
          %v931 = vpack.c.b16 %v917, %v916
          %v932 = vpack.c.b16 %v919, %v918
          %v933 = vpack.c.b16 %v921, %v920
          %v934 = vpack.c.b16 %v923, %v922
          %v935 = vpack.c.b16 %v925, %v924
          %v936 = vpack.c.b16 %v927, %v926
          %v937 = vpack.c.b16 %v929, %v928
          %946 = vmatprep.subr.bf16.mxu0 0
          %947 = vmatpush1.bf16.msra.mxu0 %v930
          %948 = vmatprep.subr.bf16.mxu0 0
          %949 = vmatpush1.bf16.msra.mxu0 %v931
          %950 = vmatprep.subr.bf16.mxu0 0
          %951 = vmatpush1.bf16.msra.mxu0 %v932
          %952 = vmatprep.subr.bf16.mxu0 0
          %953 = vmatpush1.bf16.msra.mxu0 %v933
          %954 = vmatprep.subr.bf16.mxu0 0
          %955 = vmatpush1.bf16.msra.mxu0 %v934
          %956 = vmatprep.subr.bf16.mxu0 0
          %957 = vmatpush1.bf16.msra.mxu0 %v935
          %958 = vmatprep.subr.bf16.mxu0 0
          %959 = vmatpush1.bf16.msra.mxu0 %v936
          %960 = vmatprep.subr.bf16.mxu0 0
          %961 = vmatpush1.bf16.msra.mxu0 %v937
          %962 = vmatprep.subr.bf16.mxu0 0
          %963 = vmatpush1.bf16.msra.mxu0 0
          %964 = vmatprep.subr.bf16.mxu0 0
          %965 = vmatpush1.bf16.msra.mxu0 0
          %966 = vmatprep.subr.bf16.mxu0 0
          %967 = vmatpush1.bf16.msra.mxu0 0
          %968 = vmatprep.subr.bf16.mxu0 0
          %969 = vmatpush1.bf16.msra.mxu0 0
          %970 = vmatprep.subr.bf16.mxu0 0
          %971 = vmatpush1.bf16.msra.mxu0 0
          %972 = vmatprep.subr.bf16.mxu0 0
          %973 = vmatpush1.bf16.msra.mxu0 0
          %974 = vmatprep.subr.bf16.mxu0 0
          %975 = vmatpush1.bf16.msra.mxu0 0
          %976 = vmatprep.subr.bf16.mxu0 0
          %977 = vmatpush1.bf16.msra.mxu0 0
          %978 = vmatprep.mubr.bf16.mxu0 0
          %979 = vmatmul.mubr.bf16.gmra.mrb[0].mxu0 %v880
          %v980 = vpop.f32.mrb[0].mxu0
          %v981 = vadd.f32 %v897, %v980
          %v982 = vpop.f32.mrb[0].mxu0
          %v983 = vpop.f32.mrb[0].mxu0
          %v984 = vpop.f32.mrb[0].mxu0
          %985 = vdwg.mxu0
          %986 = vst [vmem:[%s334] sm:$0x1] %v981
        $region56: #{forward.1} parent=47 // pred_fallthru
          _
        %s987 = smul.u32 2, %s28
        %p988 = scmp.lt.s32.totalorder %s27, 1
        %s989 = scalar_select %p988, %s27, 1
        %p990 = scmp.lt.s32.totalorder %s987, 1
        %s991 = scalar_select %p990, %s987, 1
        %s992 = smul.addr %s989, 4
        %s993 = sadd.s32 %s991, %s992
        %s994 = smul.addr %s993, 4
        %s995 = scalar_lea.vmem %s7, %s994
        %s996 = sand.u32 %s225, 1
        %s997 = scalar_lea.sflag [#allocation4], %s996
        %s998 = sand.u32 %s225, 1
        %s999 = scalar_lea.vmem [#allocation3], %s998
        // Predicated region
        $region57: #{forward.1} parent=47 // pred_check
          %p1000 = pneg %p209
        $region58: #{forward.1} parent=47 // pred_check_branch
          %1002 = sbr.rel (%p1000) target = $region60
        $region59: #{forward.1} parent=47 // pred_region
          %s1003 = smul.u32 2, %s28
        $region60: #{forward.1} parent=47 // pred_fallthru
          _
        // Predicated region
        $region61: #{forward.1} parent=47 // pred_check
          %p1004 = pneg %p235
        $region62: #{forward.1} parent=47 // pred_check_branch
          %1006 = sbr.rel (%p1004) target = $region64
        $region63: #{forward.1} parent=47 // pred_region
          %s1008 = ssub.s32 16, 16
          %1009 = vsyncadd %s997, %s1008
          %s1010 = smul.addr %s27, 16
          %s1011 = scalar_lea.hbm %s8, %s1010
          %s1013 = sshll.u32 %s999, 4
          %s1014 = int_to_ptr.vmem [resolvable:$true] %s1013
          %1016 = dma.vmem_to_hbm [thread:$0]  %s1014, 16, %s1011, %s997
        $region64: #{forward.1} parent=47 // pred_fallthru
          _
      $region48: #{forward.1} parent=5 // pred_fallthru
        _
      %p1017 = scmp.le.s32.totalorder 2, %s18
      // Predicated region
      $region65: #{forward.1} parent=5 // pred_check
        %p1018 = pneg %p1017
      $region66: #{forward.1} parent=5 // pred_check_branch
        %1020 = sbr.rel (%p1018) target = $region68
      $region67: #{forward.1} parent=5 // pred_region
        %s1021 = ssub.s32 %s18, 2
        // Predicated region
        $region69: #{forward.1} parent=67 // pred_check
          %p1022 = pneg %p215
        $region70: #{forward.1} parent=67 // pred_check_branch
          %1024 = sbr.rel (%p1022) target = $region72
        $region71: #{forward.1} parent=67 // pred_region
          %s1025 = smul.u32 2, %s30
          %p1026 = scmp.lt.s32.totalorder %s29, 1
          %s1027 = scalar_select %p1026, %s29, 1
          %p1028 = scmp.lt.s32.totalorder %s1025, 1
          %s1029 = scalar_select %p1028, %s1025, 1
          %s1030 = smul.addr %s1027, 4
          %s1031 = sadd.s32 %s1029, %s1030
          %s1032 = smul.addr %s1031, 4
          %s1033 = scalar_lea.vmem %s7, %s1032
        $region72: #{forward.1} parent=67 // pred_fallthru
          _
        // Predicated region
        $region73: #{forward.1} parent=67 // pred_check
          %p1034 = pneg %p241
        $region74: #{forward.1} parent=67 // pred_check_branch
          %1036 = sbr.rel (%p1034) target = $region76
        $region75: #{forward.1} parent=67 // pred_region
          %s1037 = sand.u32 %s226, 1
          %s1038 = scalar_lea.sflag [#allocation4], %s1037
          %s1039 = sand.u32 %s226, 1
          %s1040 = scalar_lea.vmem [#allocation3], %s1039
          %1041 = dma.done %s1038, 16
        $region76: #{forward.1} parent=67 // pred_fallthru
          _
      $region68: #{forward.1} parent=5 // pred_fallthru
        _
    $region6: #{forward.1} parent=1 // loop_footer
      %s22 = sadd.s32 1, %s18
    $region7: #{forward.1} parent=1 // loop_footer_branch
      %17 = sbr.rel target = $region3
    $region8: #{forward.1} parent=1 // loop_exit
      _
    %1042 = vsyncpa [#allocation4], 1
    %s1043 = scalar_lea.sflag [#allocation4], 1
    %1044 = vsyncpa %s1043, 1

</llo_original>
